<compile_context>
chip_gen: v6e
topology: v6e:2x2x1
jax: 0.10.0
libtpu: 0.0.40
codegen_flags: <defaults>
</compile_context>

<pallas_src>
import jax
import jax.numpy as jnp
from jax import lax
from jax.experimental import pallas as pl
from jax.experimental.pallas import tpu as pltpu


def _tastenet_choice_kernel(z_ref, x_ref, w1t_ref, b1_ref, w2t_ref, pmat_ref,
                            p2_ref, v_ref):
    # ---- TasteNet layer 1 on the MXU ---------------------------------------
    # z arrives in its native (tn, D) layout; contracting the last dims of
    # both operands lets the MXU absorb the batch transpose, so h is
    # lane-dense in the batch dim:  h = relu(W1^T @ z^T + b1) : (H, tn).
    h = lax.dot_general(w1t_ref[...], z_ref[...],
                        dimension_numbers=(((1,), (1,)), ((), ())),
                        preferred_element_type=jnp.float32)
    h = jnp.maximum(h + b1_ref[...], 0.0)                       # b1: (H, 1)

    # ---- Layer 2 (H -> 2) also on the MXU ----------------------------------
    # w2t is zero-padded to 8 rows; rows 0/1 hold W2^T.
    s = jnp.dot(w2t_ref[...], h, preferred_element_type=jnp.float32)  # (8, tn)
    b2 = p2_ref[:, 0:1]                                         # (2, 1)
    asc = p2_ref[:, 1:2]                                        # (2, 1)
    # transform == 'exp':  b = -exp(-(W2 h + b2))   (EUP slot, ~free)
    b = -jnp.exp(-(s[0:2, :] + b2))                             # (2, tn)

    # ---- x "transpose" via the MXU -----------------------------------------
    # x arrives natively as (tn, 6); pmat (8, 6) is a signed selection matrix,
    # so xt rows are [-cost0, -cost1, time0, time1, wait0, wait1, 0, 0],
    # lane-dense in batch.
    xt = lax.dot_general(pmat_ref[...], x_ref[...],
                         dimension_numbers=(((1,), (1,)), ((), ())),
                         preferred_element_type=jnp.float32)    # (8, tn)

    # ---- MNL utility, all lane-dense (alternatives in sublanes) ------------
    v_ref[...] = (xt[0:2, :] + xt[2:4, :] * b[0:1, :]
                  + xt[4:6, :] * b[1:2, :] + asc)               # (2, tn)


def tastenet_choice(z, x, w1, b1, w2, b2, asc_w, *, tn_max=8192):
    """z: (N, D) f32; x: (N, 3, 2) f32 (torch NKJ layout). Returns v: (N, 2)."""
    N, D = z.shape
    H = w1.shape[1]

    z = jnp.asarray(z, jnp.float32)
    # (N, 3, 2) -> (N, 6) is a metadata-only reshape of a contiguous array.
    xf = jnp.asarray(x, jnp.float32).reshape(N, 6)

    # Tile over the batch: either one block covering the whole batch, or
    # blocks of tn_max (a multiple of 128, required by the (2, tn) output
    # block's lane dim).  The last block may run past N; OOB reads only feed
    # discarded output columns and OOB writes are dropped, so no padding pass.
    if N <= tn_max:
        tn = N
        grid = (1,)
    else:
        tn = tn_max
        grid = (pl.cdiv(N, tn),)

    # Small resident parameters (constant index maps -> stay in VMEM).
    w1t = jnp.asarray(w1, jnp.float32).T                        # (H, D)
    b1c = jnp.asarray(b1, jnp.float32).reshape(H, 1)            # (H, 1)
    w2t8 = jnp.zeros((8, H), jnp.float32).at[0:2, :].set(
        jnp.asarray(w2, jnp.float32).T)                         # (8, H)
    signs = jnp.array([-1.0, -1.0, 1.0, 1.0, 1.0, 1.0], jnp.float32)
    pmat8 = jnp.zeros((8, 6), jnp.float32).at[
        jnp.arange(6), jnp.arange(6)].set(signs)                # (8, 6)
    # p2: column 0 = b2, column 1 = [asc0, asc1] = [0, Utility.linear weight].
    asc_col = (jnp.array([0.0, 1.0], jnp.float32).reshape(2, 1)
               * jnp.asarray(asc_w, jnp.float32).reshape(()))
    p2 = jnp.concatenate(
        [jnp.asarray(b2, jnp.float32).reshape(2, 1), asc_col], axis=1)  # (2, 2)

    v_t = pl.pallas_call(
        _tastenet_choice_kernel,
        out_shape=jax.ShapeDtypeStruct((2, N), jnp.float32),
        grid=grid,
        in_specs=[
            pl.BlockSpec((tn, D), lambda i: (i, 0)),   # z, native layout
            pl.BlockSpec((tn, 6), lambda i: (i, 0)),   # x, native layout
            pl.BlockSpec((H, D), lambda i: (0, 0)),    # W1^T (resident)
            pl.BlockSpec((H, 1), lambda i: (0, 0)),    # b1
            pl.BlockSpec((8, H), lambda i: (0, 0)),    # W2^T (padded rows)
            pl.BlockSpec((8, 6), lambda i: (0, 0)),    # signed selection matrix
            pl.BlockSpec((2, 2), lambda i: (0, 0)),    # [b2 | asc]
        ],
        out_specs=pl.BlockSpec((2, tn), lambda i: (0, i)),
        compiler_params=pltpu.CompilerParams(
            dimension_semantics=("parallel",),
            vmem_limit_bytes=48 * 1024 * 1024),
    )(z, xf, w1t, b1c, w2t8, pmat8, p2)

    # Back to the torch (N, 2) layout.  Layout-flexible consumers can take the
    # lane-dense (2, N) result directly and skip this transpose.
    return v_t.T


def _reference(z, x, w1, b1, w2, b2, asc_w):
    """Pure-JAX f32 reference of the torch forward."""
    h = jnp.maximum(z @ w1 + b1, 0.0)
    b = -jnp.exp(-(h @ w2 + b2))
    N = z.shape[0]
    asc = jnp.concatenate(
        [jnp.zeros((N, 1)), jnp.ones((N, 1)) * asc_w.reshape(())], axis=1)
    v = (x[:, 0, :] * (-1.0) + x[:, 1, :] * b[:, 0:1]
         + x[:, 2, :] * b[:, 1:2] + asc)
    return v


if __name__ == "__main__":
    # Small shapes consistent with the module: N=8 individuals, D=16
    # characteristics, hidden H=32, K=3 attributes, J=2 alternatives.
    N, D, H = 8, 16, 32
    key = jax.random.PRNGKey(0)
    kz, kx, k1, k2, k3, k4, k5 = jax.random.split(key, 7)

    z = jax.random.normal(kz, (N, D), dtype=jnp.float32)
    x = jax.random.normal(kx, (N, 3, 2), dtype=jnp.float32)

    # Deterministic parameter init (shapes as in nn.Linear of the module).
    w1 = jax.random.normal(k1, (D, H), dtype=jnp.float32) * 0.1   # L1 weight
    b1 = jax.random.normal(k2, (H,), dtype=jnp.float32) * 0.1     # L1 bias
    w2 = jax.random.normal(k3, (H, 2), dtype=jnp.float32) * 0.1   # L2 weight
    b2 = jax.random.normal(k4, (2,), dtype=jnp.float32) * 0.1     # L2 bias
    asc_w = jax.random.normal(k5, (1,), dtype=jnp.float32) * 0.1  # Utility.linear

    v = tastenet_choice(z, x, w1, b1, w2, b2, asc_w)
    v = jax.block_until_ready(v)

    v_ref = _reference(z, x, w1, b1, w2, b2, asc_w)
    assert v.shape == (N, 2)
    # Matmuls run at the MXU's default precision (bf16 multiply, f32
    # accumulate), including the x selection matmul, so use a bf16-class
    # tolerance.
    assert jnp.allclose(v, v_ref, atol=2e-2, rtol=2e-2), (
        float(jnp.max(jnp.abs(v - v_ref))))

    print("KERNEL_OK")
</pallas_src>

<mosaic_0001>
module attributes {stable_mosaic.version = 11 : i64} {
  func.func @_tastenet_choice_kernel(%arg0: i32, %arg1: memref<8x16xf32, #tpu.memory_space<vmem>>, %arg2: memref<8x6xf32, #tpu.memory_space<vmem>>, %arg3: memref<32x16xf32, #tpu.memory_space<vmem>>, %arg4: memref<32x1xf32, #tpu.memory_space<vmem>>, %arg5: memref<8x32xf32, #tpu.memory_space<vmem>>, %arg6: memref<8x6xf32, #tpu.memory_space<vmem>>, %arg7: memref<2x2xf32, #tpu.memory_space<vmem>>, %arg8: memref<2x8xf32, #tpu.memory_space<vmem>>) attributes {dimension_semantics = [#tpu.dimension_semantics<parallel>], iteration_bounds = array<i64: 1>, scalar_prefetch = 0 : i64, scratch_operands = 0 : i64, tpu.core_type = #tpu.core_type<tc>, window_params = [{transform_indices = @transform_0, window_bounds = array<i64: 8, 16>}, {transform_indices = @transform_1, window_bounds = array<i64: 8, 6>}, {pipeline_mode = #tpu.pipeline_mode<synchronous>, transform_indices = @transform_2, window_bounds = array<i64: 32, 16>}, {pipeline_mode = #tpu.pipeline_mode<synchronous>, transform_indices = @transform_3, window_bounds = array<i64: 32, 1>}, {pipeline_mode = #tpu.pipeline_mode<synchronous>, transform_indices = @transform_4, window_bounds = array<i64: 8, 32>}, {pipeline_mode = #tpu.pipeline_mode<synchronous>, transform_indices = @transform_5, window_bounds = array<i64: 8, 6>}, {pipeline_mode = #tpu.pipeline_mode<synchronous>, transform_indices = @transform_6, window_bounds = array<i64: 2, 2>}, {transform_indices = @transform_7, window_bounds = array<i64: 2, 8>}]} {
    %c0 = arith.constant 0 : index
    %c0_0 = arith.constant 0 : index
    %0 = vector.load %arg3[%c0, %c0_0] : memref<32x16xf32, #tpu.memory_space<vmem>>, vector<32x16xf32>
    %c0_1 = arith.constant 0 : index
    %c0_2 = arith.constant 0 : index
    %1 = vector.load %arg1[%c0_1, %c0_2] : memref<8x16xf32, #tpu.memory_space<vmem>>, vector<8x16xf32>
    %cst = arith.constant dense<0.000000e+00> : vector<32x8xf32>
    %2 = tpu.matmul %0, %1, %cst {dimension_numbers = #tpu.dot_dimension_numbers<[1], [1], [0], [0], [0, 0, 1, 0], [], []>} : vector<32x16xf32>, vector<8x16xf32>, vector<32x8xf32> -> vector<32x8xf32>
    %c0_3 = arith.constant 0 : index
    %c0_4 = arith.constant 0 : index
    %3 = vector.load %arg4[%c0_3, %c0_4] : memref<32x1xf32, #tpu.memory_space<vmem>>, vector<32x1xf32>
    %4 = vector.broadcast %3 : vector<32x1xf32> to vector<32x8xf32>
    %5 = arith.addf %2, %4 : vector<32x8xf32>
    %cst_5 = arith.constant 0.000000e+00 : f32
    %6 = vector.broadcast %cst_5 : f32 to vector<32x8xf32>
    %7 = arith.maximumf %5, %6 : vector<32x8xf32>
    %c0_6 = arith.constant 0 : index
    %c0_7 = arith.constant 0 : index
    %8 = vector.load %arg5[%c0_6, %c0_7] : memref<8x32xf32, #tpu.memory_space<vmem>>, vector<8x32xf32>
    %cst_8 = arith.constant dense<0.000000e+00> : vector<8x8xf32>
    %9 = tpu.matmul %8, %7, %cst_8 {dimension_numbers = #tpu.dot_dimension_numbers<[1], [0], [0], [1], [0, 0, 1, 1], [], []>} : vector<8x32xf32>, vector<32x8xf32>, vector<8x8xf32> -> vector<8x8xf32>
    %c0_9 = arith.constant 0 : index
    %c0_10 = arith.constant 0 : index
    %10 = vector.load %arg7[%c0_9, %c0_10] : memref<2x2xf32, #tpu.memory_space<vmem>>, vector<2x1xf32>
    %c0_11 = arith.constant 0 : index
    %c1 = arith.constant 1 : index
    %11 = vector.load %arg7[%c0_11, %c1] : memref<2x2xf32, #tpu.memory_space<vmem>>, vector<2x1xf32>
    %12 = vector.extract_strided_slice %9 {offsets = [0, 0], sizes = [2, 8], strides = [1, 1]} : vector<8x8xf32> to vector<2x8xf32>
    %13 = vector.broadcast %10 : vector<2x1xf32> to vector<2x8xf32>
    %14 = arith.addf %12, %13 : vector<2x8xf32>
    %cst_12 = arith.constant 0.000000e+00 : f32
    %15 = vector.broadcast %cst_12 : f32 to vector<2x8xf32>
    %16 = arith.subf %15, %14 : vector<2x8xf32>
    %17 = math.exp %16 : vector<2x8xf32>
    %cst_13 = arith.constant 0.000000e+00 : f32
    %18 = vector.broadcast %cst_13 : f32 to vector<2x8xf32>
    %19 = arith.subf %18, %17 : vector<2x8xf32>
    %c0_14 = arith.constant 0 : index
    %c0_15 = arith.constant 0 : index
    %20 = vector.load %arg6[%c0_14, %c0_15] : memref<8x6xf32, #tpu.memory_space<vmem>>, vector<8x6xf32>
    %c0_16 = arith.constant 0 : index
    %c0_17 = arith.constant 0 : index
    %21 = vector.load %arg2[%c0_16, %c0_17] : memref<8x6xf32, #tpu.memory_space<vmem>>, vector<8x6xf32>
    %cst_18 = arith.constant dense<0.000000e+00> : vector<8x8xf32>
    %22 = tpu.matmul %20, %21, %cst_18 {dimension_numbers = #tpu.dot_dimension_numbers<[1], [1], [0], [0], [0, 0, 1, 0], [], []>} : vector<8x6xf32>, vector<8x6xf32>, vector<8x8xf32> -> vector<8x8xf32>
    %23 = vector.extract_strided_slice %22 {offsets = [0, 0], sizes = [2, 8], strides = [1, 1]} : vector<8x8xf32> to vector<2x8xf32>
    %24 = vector.extract_strided_slice %22 {offsets = [2, 0], sizes = [2, 8], strides = [1, 1]} : vector<8x8xf32> to vector<2x8xf32>
    %25 = vector.extract_strided_slice %19 {offsets = [0, 0], sizes = [1, 8], strides = [1, 1]} : vector<2x8xf32> to vector<1x8xf32>
    %26 = vector.broadcast %25 : vector<1x8xf32> to vector<2x8xf32>
    %27 = arith.mulf %24, %26 : vector<2x8xf32>
    %28 = arith.addf %23, %27 : vector<2x8xf32>
    %29 = vector.extract_strided_slice %22 {offsets = [4, 0], sizes = [2, 8], strides = [1, 1]} : vector<8x8xf32> to vector<2x8xf32>
    %30 = vector.extract_strided_slice %19 {offsets = [1, 0], sizes = [1, 8], strides = [1, 1]} : vector<2x8xf32> to vector<1x8xf32>
    %31 = vector.broadcast %30 : vector<1x8xf32> to vector<2x8xf32>
    %32 = arith.mulf %29, %31 : vector<2x8xf32>
    %33 = arith.addf %28, %32 : vector<2x8xf32>
    %34 = vector.broadcast %11 : vector<2x1xf32> to vector<2x8xf32>
    %35 = arith.addf %33, %34 : vector<2x8xf32>
    %c0_19 = arith.constant 0 : index
    %c0_20 = arith.constant 0 : index
    %36 = vector.load %arg8[%c0_19, %c0_20] : memref<2x8xf32, #tpu.memory_space<vmem>>, vector<2x8xf32>
    tpu.vector_store %arg8[%c0_19, %c0_20], %35 {strides = array<i32>} : memref<2x8xf32, #tpu.memory_space<vmem>>, vector<2x8xf32>,
    return
  }
  func.func @transform_0(%arg0: i32) -> (i32, i32) {
    %c0_i32 = arith.constant 0 : i32
    %c0_i32_0 = arith.constant 0 : i32
    return %arg0, %c0_i32 : i32, i32
  }
  func.func @transform_1(%arg0: i32) -> (i32, i32) {
    %c0_i32 = arith.constant 0 : i32
    %c0_i32_0 = arith.constant 0 : i32
    return %arg0, %c0_i32 : i32, i32
  }
  func.func @transform_2(%arg0: i32) -> (i32, i32) {
    %c0_i32 = arith.constant 0 : i32
    %c0_i32_0 = arith.constant 0 : i32
    %c0_i32_1 = arith.constant 0 : i32
    return %c0_i32, %c0_i32_0 : i32, i32
  }
  func.func @transform_3(%arg0: i32) -> (i32, i32) {
    %c0_i32 = arith.constant 0 : i32
    %c0_i32_0 = arith.constant 0 : i32
    %c0_i32_1 = arith.constant 0 : i32
    return %c0_i32, %c0_i32_0 : i32, i32
  }
  func.func @transform_4(%arg0: i32) -> (i32, i32) {
    %c0_i32 = arith.constant 0 : i32
    %c0_i32_0 = arith.constant 0 : i32
    %c0_i32_1 = arith.constant 0 : i32
    return %c0_i32, %c0_i32_0 : i32, i32
  }
  func.func @transform_5(%arg0: i32) -> (i32, i32) {
    %c0_i32 = arith.constant 0 : i32
    %c0_i32_0 = arith.constant 0 : i32
    %c0_i32_1 = arith.constant 0 : i32
    return %c0_i32, %c0_i32_0 : i32, i32
  }
  func.func @transform_6(%arg0: i32) -> (i32, i32) {
    %c0_i32 = arith.constant 0 : i32
    %c0_i32_0 = arith.constant 0 : i32
    %c0_i32_1 = arith.constant 0 : i32
    return %c0_i32, %c0_i32_0 : i32, i32
  }
  func.func @transform_7(%arg0: i32) -> (i32, i32) {
    %c0_i32 = arith.constant 0 : i32
    %c0_i32_0 = arith.constant 0 : i32
    return %c0_i32, %arg0 : i32, i32
  }
}

</mosaic_0001>

<llo_original>
// kernel: tpu_custom_call.1
$region0: #{tpu_custom_call.1}
  #allocation0 [shape = 'u32[]', space=smem, size = 0x4, offset = 0x4, fixed_abs, tag = 'smem constant byte address 0x4 - core index']
  #allocation1 [shape = 'u32[144,128]{1,0:T(1,128)}', space=vmem, size = 0x12000, scoped, tag = 'internal scratch']
  %s0 = inlined_call_operand.vmem [shape: f32[8,16], index: 0, kind: input, shape index: {}]
  %s1 = inlined_call_operand.vmem [shape: f32[8,6], index: 1, kind: input, shape index: {}]
  %s2 = inlined_call_operand.vmem [shape: f32[32,16], index: 2, kind: input, shape index: {}]
  %s3 = inlined_call_operand.vmem [shape: f32[32,1], index: 3, kind: input, shape index: {}]
  %s4 = inlined_call_operand.vmem [shape: f32[8,32], index: 4, kind: input, shape index: {}]
  %s5 = inlined_call_operand.vmem [shape: f32[8,6], index: 5, kind: input, shape index: {}]
  %s6 = inlined_call_operand.vmem [shape: f32[2,2], index: 6, kind: input, shape index: {}]
  %s7 = inlined_call_operand.hbm [shape: f32[2,8], index: 7, kind: output, shape index: {}]
  %s8 = sld [smem:[#allocation0]]
  $region38: #{tpu_custom_call.1} parent=0
    _
  %s10 = ssub.s32 1, %s8
  %s11 = scalar_select 0, %s10, %s8
  $region1: #{tpu_custom_call.1} parent=0
    #allocation2 [shape = 'u8[1024]{0}', space=vmem, size = 0x400, scoped, tag = 'output window, operand 0, single buffered']
    #allocation3 [shape = 's32[1]{0}', space=sflag, size = 0x4, scoped, tag = 'scoped memory for tpu_custom_call.1']
    %12 = vsyncpa [#allocation3], 0
    // Predicated region
    $region2: #{tpu_custom_call.1} parent=1 // pred_check
      _
    $region3: #{tpu_custom_call.1} parent=1 // pred_check_branch
      %14 = sbr.rel (0) target = $region5
    $region4: #{tpu_custom_call.1} parent=1 // pred_region
      _
    $region5: #{tpu_custom_call.1} parent=1 // pred_fallthru
      _
    // Predicated region
    $region6: #{tpu_custom_call.1} parent=1 // pred_check
      _
    $region7: #{tpu_custom_call.1} parent=1 // pred_check_branch
      %16 = sbr.rel (0) target = $region9
    $region8: #{tpu_custom_call.1} parent=1 // pred_region
      _
    $region9: #{tpu_custom_call.1} parent=1 // pred_fallthru
      _
    // Predicated region
    $region10: #{tpu_custom_call.1} parent=1 // pred_check
      _
    $region11: #{tpu_custom_call.1} parent=1 // pred_check_branch
      %18 = sbr.rel (0) target = $region13
    $region12: #{tpu_custom_call.1} parent=1 // pred_region
      _
    $region13: #{tpu_custom_call.1} parent=1 // pred_fallthru
      _
    // Predicated region
    $region14: #{tpu_custom_call.1} parent=1 // pred_check
      _
    $region15: #{tpu_custom_call.1} parent=1 // pred_check_branch
      %20 = sbr.rel (0) target = $region17
    $region16: #{tpu_custom_call.1} parent=1 // pred_region
      _
    $region17: #{tpu_custom_call.1} parent=1 // pred_fallthru
      _
    // Predicated region
    $region18: #{tpu_custom_call.1} parent=1 // pred_check
      _
    $region19: #{tpu_custom_call.1} parent=1 // pred_check_branch
      %22 = sbr.rel (0) target = $region21
    $region20: #{tpu_custom_call.1} parent=1 // pred_region
      _
    $region21: #{tpu_custom_call.1} parent=1 // pred_fallthru
      _
    // Predicated region
    $region22: #{tpu_custom_call.1} parent=1 // pred_check
      _
    $region23: #{tpu_custom_call.1} parent=1 // pred_check_branch
      %24 = sbr.rel (0) target = $region25
    $region24: #{tpu_custom_call.1} parent=1 // pred_region
      _
    $region25: #{tpu_custom_call.1} parent=1 // pred_fallthru
      _
    // Predicated region
    $region26: #{tpu_custom_call.1} parent=1 // pred_check
      _
    $region27: #{tpu_custom_call.1} parent=1 // pred_check_branch
      %26 = sbr.rel (0) target = $region29
    $region28: #{tpu_custom_call.1} parent=1 // pred_region
      _
    $region29: #{tpu_custom_call.1} parent=1 // pred_fallthru
      _
    %v27 = vld [vmem:[%s2] sm:$0xff]
    %v28 = vld [vmem:[%s2 + $0x8] sm:$0xff]
    %v29 = vld [vmem:[%s2 + $0x10] sm:$0xff]
    %v30 = vld [vmem:[%s2 + $0x18] sm:$0xff]
    %v31 = vld [vmem:[%s0] sm:$0xff]
    %v32 = vld [vmem:[%s3] sm:$0xff]
    %v33 = vld [vmem:[%s3 + $0x8] sm:$0xff]
    %v34 = vld [vmem:[%s3 + $0x10] sm:$0xff]
    %v35 = vld [vmem:[%s3 + $0x18] sm:$0xff]
    %37 = vset.pattern.permute.xlu0 0
    %38 = vperm.xlu0 %37, %v32
    %v39 = vpop.permute.xlu0 %38
    %42 = vset.pattern.permute.xlu0 0
    %43 = vperm.xlu0 %42, %v33
    %v44 = vpop.permute.xlu0 %43
    %47 = vset.pattern.permute.xlu0 0
    %48 = vperm.xlu0 %47, %v34
    %v49 = vpop.permute.xlu0 %48
    %52 = vset.pattern.permute.xlu0 0
    %53 = vperm.xlu0 %52, %v35
    %v54 = vpop.permute.xlu0 %53
    %vm56 = vcmask 130048
    %v58 = vsel %vm56, %v27, 0
    %v61 = vsel %vm56, %v28, 0
    %v64 = vsel %vm56, %v29, 0
    %v67 = vsel %vm56, %v30, 0
    %v70 = vsel %vm56, %v31, 0
    %72 = vmatprep.subr.mxu0 0.0
    %73 = vmatpush1.xpose.msra.mxu0 0.0
    %74 = vmatprep.subr.mxu0 0.0
    %75 = vmatpush1.xpose.msra.mxu0 0.0
    %76 = vmatprep.subr.mxu0 0.0
    %77 = vmatpush1.xpose.msra.mxu0 0.0
    %78 = vmatprep.subr.mxu0 0.0
    %79 = vmatpush1.xpose.msra.mxu0 0.0
    %80 = vmatprep.subr.mxu0 0.0
    %81 = vmatpush1.xpose.msra.mxu0 0.0
    %82 = vmatprep.subr.mxu0 0.0
    %83 = vmatpush1.xpose.msra.mxu0 0.0
    %84 = vmatprep.subr.mxu0 0.0
    %85 = vmatpush1.xpose.msra.mxu0 0.0
    %86 = vmatprep.subr.mxu0 0.0
    %87 = vmatpush1.xpose.msra.mxu0 0.0
    %88 = vmatprep.subr.mxu0 0.0
    %89 = vmatpush1.xpose.msra.mxu0 0.0
    %90 = vmatprep.subr.mxu0 0.0
    %91 = vmatpush1.xpose.msra.mxu0 0.0
    %92 = vmatprep.subr.mxu0 0.0
    %93 = vmatpush1.xpose.msra.mxu0 0.0
    %94 = vmatprep.subr.mxu0 0.0
    %95 = vmatpush1.xpose.msra.mxu0 0.0
    %96 = vmatprep.subr.mxu0 0.0
    %97 = vmatpush1.xpose.msra.mxu0 0.0
    %98 = vmatprep.subr.mxu0 0.0
    %99 = vmatpush1.xpose.msra.mxu0 0.0
    %100 = vmatprep.subr.mxu0 0.0
    %101 = vmatpush1.xpose.msra.mxu0 0.0
    %102 = vmatprep.subr.mxu0 0.0
    %103 = vmatpush1.xpose.msra.mxu0 %v70
    %104 = vmatprep.subr.mxu0 0.0
    %105 = vmatpush2.xpose.msra.mxu0 0.0
    %106 = vmatprep.subr.mxu0 0.0
    %107 = vmatpush2.xpose.msra.mxu0 0.0
    %108 = vmatprep.subr.mxu0 0.0
    %109 = vmatpush2.xpose.msra.mxu0 0.0
    %110 = vmatprep.subr.mxu0 0.0
    %111 = vmatpush2.xpose.msra.mxu0 0.0
    %112 = vmatprep.subr.mxu0 0.0
    %113 = vmatpush2.xpose.msra.mxu0 0.0
    %114 = vmatprep.subr.mxu0 0.0
    %115 = vmatpush2.xpose.msra.mxu0 0.0
    %116 = vmatprep.subr.mxu0 0.0
    %117 = vmatpush2.xpose.msra.mxu0 0.0
    %118 = vmatprep.subr.mxu0 0.0
    %119 = vmatpush2.xpose.msra.mxu0 0.0
    %120 = vmatprep.subr.mxu0 0.0
    %121 = vmatpush2.xpose.msra.mxu0 0.0
    %122 = vmatprep.subr.mxu0 0.0
    %123 = vmatpush2.xpose.msra.mxu0 0.0
    %124 = vmatprep.subr.mxu0 0.0
    %125 = vmatpush2.xpose.msra.mxu0 0.0
    %126 = vmatprep.subr.mxu0 0.0
    %127 = vmatpush2.xpose.msra.mxu0 0.0
    %128 = vmatprep.subr.mxu0 0.0
    %129 = vmatpush2.xpose.msra.mxu0 0.0
    %130 = vmatprep.subr.mxu0 0.0
    %131 = vmatpush2.xpose.msra.mxu0 0.0
    %132 = vmatprep.subr.mxu0 0.0
    %133 = vmatpush2.xpose.msra.mxu0 0.0
    %134 = vmatprep.subr.mxu0 0.0
    %135 = vmatpush2.xpose.msra.mxu0 0.0
    %136 = vmatprep.mubr.f32.mxu0 0.0
    %137 = vmatmul.mubr.f32.gmra.mxu0 %v58
    %v138 = vpop.f32.mrf.mxu0
    %v139 = vadd.f32 %v39, %v138
    %v140 = vpop.f32.mrf.mxu0
    %141 = vmatprep.mubr.f32.mxu0 0.0
    %142 = vmatmul.mubr.f32.gmra.mxu0 %v61
    %v143 = vpop.f32.mrf.mxu0
    %v144 = vadd.f32 %v44, %v143
    %v145 = vpop.f32.mrf.mxu0
    %146 = vmatprep.mubr.f32.mxu0 0.0
    %147 = vmatmul.mubr.f32.gmra.mxu0 %v64
    %v148 = vpop.f32.mrf.mxu0
    %v149 = vadd.f32 %v49, %v148
    %v150 = vpop.f32.mrf.mxu0
    %151 = vmatprep.mubr.f32.mxu0 0.0
    %152 = vmatmul.mubr.f32.gmra.mxu0 %v67
    %v153 = vpop.f32.mrf.mxu0
    %v154 = vadd.f32 %v54, %v153
    %v155 = vpop.f32.mrf.mxu0
    %156 = vdwg.mxu0
    %v157 = vmax.f32 %v139, 0.0
    %v158 = vmax.f32 %v144, 0.0
    %v159 = vmax.f32 %v149, 0.0
    %v160 = vmax.f32 %v154, 0.0
    %v161 = vld [vmem:[%s4] sm:$0xff]
    %vm162 = vcmask 261120
    %v164 = vsel %vm162, %v161, 0
    %166 = vmatprep.subr.mxu0 0.0
    %167 = vmatpush1.msra.mxu0 0.0
    %168 = vmatprep.subr.mxu0 0.0
    %169 = vmatpush1.msra.mxu0 0.0
    %170 = vmatprep.subr.mxu0 0.0
    %171 = vmatpush1.msra.mxu0 0.0
    %172 = vmatprep.subr.mxu0 0.0
    %173 = vmatpush1.msra.mxu0 0.0
    %174 = vmatprep.subr.mxu0 0.0
    %175 = vmatpush1.msra.mxu0 0.0
    %176 = vmatprep.subr.mxu0 0.0
    %177 = vmatpush1.msra.mxu0 0.0
    %178 = vmatprep.subr.mxu0 0.0
    %179 = vmatpush1.msra.mxu0 0.0
    %180 = vmatprep.subr.mxu0 0.0
    %181 = vmatpush1.msra.mxu0 0.0
    %182 = vmatprep.subr.mxu0 0.0
    %183 = vmatpush1.msra.mxu0 0.0
    %184 = vmatprep.subr.mxu0 0.0
    %185 = vmatpush1.msra.mxu0 0.0
    %186 = vmatprep.subr.mxu0 0.0
    %187 = vmatpush1.msra.mxu0 0.0
    %188 = vmatprep.subr.mxu0 0.0
    %189 = vmatpush1.msra.mxu0 0.0
    %190 = vmatprep.subr.mxu0 0.0
    %191 = vmatpush1.msra.mxu0 %v160
    %192 = vmatprep.subr.mxu0 0.0
    %193 = vmatpush1.msra.mxu0 %v159
    %194 = vmatprep.subr.mxu0 0.0
    %195 = vmatpush1.msra.mxu0 %v158
    %196 = vmatprep.subr.mxu0 0.0
    %197 = vmatpush1.msra.mxu0 %v157
    %198 = vmatprep.subr.mxu0 0.0
    %199 = vmatpush2.msra.mxu0 0.0
    %200 = vmatprep.subr.mxu0 0.0
    %201 = vmatpush2.msra.mxu0 0.0
    %202 = vmatprep.subr.mxu0 0.0
    %203 = vmatpush2.msra.mxu0 0.0
    %204 = vmatprep.subr.mxu0 0.0
    %205 = vmatpush2.msra.mxu0 0.0
    %206 = vmatprep.subr.mxu0 0.0
    %207 = vmatpush2.msra.mxu0 0.0
    %208 = vmatprep.subr.mxu0 0.0
    %209 = vmatpush2.msra.mxu0 0.0
    %210 = vmatprep.subr.mxu0 0.0
    %211 = vmatpush2.msra.mxu0 0.0
    %212 = vmatprep.subr.mxu0 0.0
    %213 = vmatpush2.msra.mxu0 0.0
    %214 = vmatprep.subr.mxu0 0.0
    %215 = vmatpush2.msra.mxu0 0.0
    %216 = vmatprep.subr.mxu0 0.0
    %217 = vmatpush2.msra.mxu0 0.0
    %218 = vmatprep.subr.mxu0 0.0
    %219 = vmatpush2.msra.mxu0 0.0
    %220 = vmatprep.subr.mxu0 0.0
    %221 = vmatpush2.msra.mxu0 0.0
    %222 = vmatprep.subr.mxu0 0.0
    %223 = vmatpush2.msra.mxu0 0.0
    %224 = vmatprep.subr.mxu0 0.0
    %225 = vmatpush2.msra.mxu0 0.0
    %226 = vmatprep.subr.mxu0 0.0
    %227 = vmatpush2.msra.mxu0 0.0
    %228 = vmatprep.subr.mxu0 0.0
    %229 = vmatpush2.msra.mxu0 0.0
    %230 = vmatprep.mubr.f32.mxu0 0.0
    %231 = vmatmul.mubr.f32.gmra.mxu0 %v164
    %v232 = vpop.f32.mrf.mxu0
    %v233 = vadd.f32 0.0, %v232
    %v234 = vpop.f32.mrf.mxu0
    %235 = vdwg.mxu0
    %v236 = vld [vmem:[%s6] sm:$0x3]
    %238 = vset.pattern.permute.xlu0 0
    %239 = vperm.xlu0 %238, %v236
    %v240 = vpop.permute.xlu0 %239
    %v242 = vadd.f32 %v233, %v240
    %v243 = vsub.f32 0.0, %v242
    %v244 = vmul.f32 %v243, 1.442695
    %v245 = vpow.pop %v244
    %v246 = vsub.f32 0.0, %v245
    %v247 = vld [vmem:[%s5] sm:$0xff]
    %v248 = vld [vmem:[%s1] sm:$0xff]
    %vm249 = vcmask 48128
    %v251 = vsel %vm249, %v247, 0
    %v254 = vsel %vm249, %v248, 0
    %256 = vmatprep.subr.mxu0 0.0
    %257 = vmatpush1.xpose.msra.mxu0 0.0
    %258 = vmatprep.subr.mxu0 0.0
    %259 = vmatpush1.xpose.msra.mxu0 0.0
    %260 = vmatprep.subr.mxu0 0.0
    %261 = vmatpush1.xpose.msra.mxu0 0.0
    %262 = vmatprep.subr.mxu0 0.0
    %263 = vmatpush1.xpose.msra.mxu0 0.0
    %264 = vmatprep.subr.mxu0 0.0
    %265 = vmatpush1.xpose.msra.mxu0 0.0
    %266 = vmatprep.subr.mxu0 0.0
    %267 = vmatpush1.xpose.msra.mxu0 0.0
    %268 = vmatprep.subr.mxu0 0.0
    %269 = vmatpush1.xpose.msra.mxu0 0.0
    %270 = vmatprep.subr.mxu0 0.0
    %271 = vmatpush1.xpose.msra.mxu0 0.0
    %272 = vmatprep.subr.mxu0 0.0
    %273 = vmatpush1.xpose.msra.mxu0 0.0
    %274 = vmatprep.subr.mxu0 0.0
    %275 = vmatpush1.xpose.msra.mxu0 0.0
    %276 = vmatprep.subr.mxu0 0.0
    %277 = vmatpush1.xpose.msra.mxu0 0.0
    %278 = vmatprep.subr.mxu0 0.0
    %279 = vmatpush1.xpose.msra.mxu0 0.0
    %280 = vmatprep.subr.mxu0 0.0
    %281 = vmatpush1.xpose.msra.mxu0 0.0
    %282 = vmatprep.subr.mxu0 0.0
    %283 = vmatpush1.xpose.msra.mxu0 0.0
    %284 = vmatprep.subr.mxu0 0.0
    %285 = vmatpush1.xpose.msra.mxu0 0.0
    %286 = vmatprep.subr.mxu0 0.0
    %287 = vmatpush1.xpose.msra.mxu0 %v254
    %288 = vmatprep.subr.mxu0 0.0
    %289 = vmatpush2.xpose.msra.mxu0 0.0
    %290 = vmatprep.subr.mxu0 0.0
    %291 = vmatpush2.xpose.msra.mxu0 0.0
    %292 = vmatprep.subr.mxu0 0.0
    %293 = vmatpush2.xpose.msra.mxu0 0.0
    %294 = vmatprep.subr.mxu0 0.0
    %295 = vmatpush2.xpose.msra.mxu0 0.0
    %296 = vmatprep.subr.mxu0 0.0
    %297 = vmatpush2.xpose.msra.mxu0 0.0
    %298 = vmatprep.subr.mxu0 0.0
    %299 = vmatpush2.xpose.msra.mxu0 0.0
    %300 = vmatprep.subr.mxu0 0.0
    %301 = vmatpush2.xpose.msra.mxu0 0.0
    %302 = vmatprep.subr.mxu0 0.0
    %303 = vmatpush2.xpose.msra.mxu0 0.0
    %304 = vmatprep.subr.mxu0 0.0
    %305 = vmatpush2.xpose.msra.mxu0 0.0
    %306 = vmatprep.subr.mxu0 0.0
    %307 = vmatpush2.xpose.msra.mxu0 0.0
    %308 = vmatprep.subr.mxu0 0.0
    %309 = vmatpush2.xpose.msra.mxu0 0.0
    %310 = vmatprep.subr.mxu0 0.0
    %311 = vmatpush2.xpose.msra.mxu0 0.0
    %312 = vmatprep.subr.mxu0 0.0
    %313 = vmatpush2.xpose.msra.mxu0 0.0
    %314 = vmatprep.subr.mxu0 0.0
    %315 = vmatpush2.xpose.msra.mxu0 0.0
    %316 = vmatprep.subr.mxu0 0.0
    %317 = vmatpush2.xpose.msra.mxu0 0.0
    %318 = vmatprep.subr.mxu0 0.0
    %319 = vmatpush2.xpose.msra.mxu0 0.0
    %320 = vmatprep.mubr.f32.mxu0 0.0
    %321 = vmatmul.mubr.f32.gmra.mxu0 %v251
    %v322 = vpop.f32.mrf.mxu0
    %v323 = vadd.f32 0.0, %v322
    %v324 = vpop.f32.mrf.mxu0
    %325 = vdwg.mxu0
    %v326 = vlaneseq
    %v327 = vshrl.u32 %v326, 7
    %v328 = vsub.s32 0, %v327
    %v329 = vrot.slane %v246, %v328
    %v330 = vmul.f32 %v323, %v329
    %v332 = vrot.slane %v330, 2
    %v334 = vadd.f32 %v323, %v332
    %v335 = vlaneseq
    %v336 = vshrl.u32 %v335, 7
    %v337 = vsub.s32 1, %v336
    %v338 = vrot.slane %v246, %v337
    %v339 = vmul.f32 %v323, %v338
    %v341 = vrot.slane %v339, 4
    %v343 = vadd.f32 %v334, %v341
    %344 = vset.pattern.permute.xlu0 1
    %345 = vperm.xlu0 %344, %v236
    %v346 = vpop.permute.xlu0 %345
    %v348 = vadd.f32 %v343, %v346
    %vm349 = vcmask 58368
    %350 = vst.msk [vmem:[#allocation2] sm:$0x3] %vm349, %v348
    // Predicated region
    $region30: #{tpu_custom_call.1} parent=1 // pred_check
      _
    $region31: #{tpu_custom_call.1} parent=1 // pred_check_branch
      %352 = sbr.rel (0) target = $region33
    $region32: #{tpu_custom_call.1} parent=1 // pred_region
      %s354 = ssub.s32 32, 32
      %355 = vsyncadd [#allocation3], %s354
      %s357 = sshll.u32 [#allocation2], 4
      %s358 = int_to_ptr.vmem [resolvable:$true] %s357
      %360 = dma.vmem_to_hbm [thread:$0]  %s358, 32, %s7, [#allocation3]
    $region33: #{tpu_custom_call.1} parent=1 // pred_fallthru
      _
    // Predicated region
    $region34: #{tpu_custom_call.1} parent=1 // pred_check
      _
    $region35: #{tpu_custom_call.1} parent=1 // pred_check_branch
      %362 = sbr.rel (0) target = $region37
    $region36: #{tpu_custom_call.1} parent=1 // pred_region
      %363 = dma.done [#allocation3], 32
    $region37: #{tpu_custom_call.1} parent=1 // pred_fallthru
      _
    %364 = vsyncpa [#allocation3], 1

</llo_original>
